<compile_context>
chip_gen: v7x
topology: tpu7x:2x2x1
jax: 0.10.0
libtpu: 0.0.40
codegen_flags: <defaults>
</compile_context>

<pallas_src>
import math

import jax
import jax.numpy as jnp
from jax.experimental import pallas as pl
from jax.experimental.pallas import tpu as pltpu


def attention_kernel(hidden_ref, enc_ref, wh_ref, we_ref, b_ref, v_ref,
                     out_ref, hproj_sc, scores_sc):
    """Fused split-linear -> relu -> v mul-reduce -> (last-step) softmax."""
    t = pl.program_id(1)
    nt = scores_sc.shape[0]                    # static number of T chunks
    TB, TT, E = enc_ref.shape
    two_h = wh_ref.shape[1]

    # Hidden half of the contraction is timestep-invariant: compute once per
    # batch block, with the bias folded in (a (TB,2H) add instead of (TB,T,2H)).
    @pl.when(t == 0)
    def _():
        hproj_sc[...] = (
            jnp.dot(hidden_ref[...], wh_ref[...],
                    preferred_element_type=jnp.float32) + b_ref[...])

    # Encoder half as one dense 2-D matmul on the MXU (tile_t % 8 == 0 so the
    # (TB,TT,E)->(TB*TT,E) merge is layout-preserving, no VMEM copy).
    e_proj = jnp.dot(enc_ref[...].reshape(TB * TT, E), we_ref[...],
                     preferred_element_type=jnp.float32).reshape(TB, TT, two_h)

    # energy = relu(h@W_h + enc@W_e + b)   (VPU, f32)
    energy = jnp.maximum(e_proj + hproj_sc[...][:, None, :], 0.0)

    # scores chunk = energy . v  as a VPU multiply + lane reduce
    # (no width-1 MXU matmul, no relayout slice).
    scores_sc[t] = jnp.sum(energy * v_ref[...], axis=-1)        # (TB, TT)

    # Softmax over the full timestep axis once all chunks are resident.
    @pl.when(t == nt - 1)
    def _():
        s = scores_sc[...]                                       # (nt, TB, TT)
        m = jnp.max(jnp.max(s, axis=2, keepdims=True), axis=0, keepdims=True)
        e = jnp.exp(s - m)
        denom = jnp.sum(jnp.sum(e, axis=2, keepdims=True), axis=0, keepdims=True)
        p = e / denom                         # exact divide -> rows sum to 1
        for ti in range(nt):                  # static lane offsets only
            out_ref[:, 0, ti * TT:(ti + 1) * TT] = p[ti]


def _pick_tile(full, preferred, align):
    """Largest divisor of `full` that is <= preferred and a multiple of `align`;
    falls back to the full (un-tiled) extent."""
    best = None
    for cand in range(align, min(preferred, full) + 1, align):
        if full % cand == 0:
            best = cand
    return best if best is not None else full


def prepare_params(weight, bias, v, dh, param_dtype=jnp.float32):
    """One-time parameter prep: split + transpose the Linear weight.

    weight: (2H, Dh+E) torch nn.Linear layout; bias: (2H,); v: (2H,)
    Returns (w_h (Dh,2H), w_e (E,2H), bias (1,2H) f32, v (1,2H) f32).
    Weights may be cast once here (e.g. bf16 for the MXU); bias/v stay f32 so the
    VPU/EUP epilogue math remains f32 (important on v5e: no native bf16 VPU/EUP).
    """
    two_h = weight.shape[0]
    w_h = jnp.asarray(weight[:, :dh].T, dtype=param_dtype)
    w_e = jnp.asarray(weight[:, dh:].T, dtype=param_dtype)
    b2 = jnp.asarray(bias, dtype=jnp.float32).reshape(1, two_h)
    v2 = jnp.asarray(v, dtype=jnp.float32).reshape(1, two_h)
    return w_h, w_e, b2, v2


def attention_forward(hidden, encoder_outputs, w_h, w_e, b2, v2, *,
                      tile_b=None, tile_t=None, operand_dtype=None,
                      vmem_limit_bytes=None):
    """
    hidden:          (B, Dh)
    encoder_outputs: (B, T, E)
    w_h, w_e, b2, v2: outputs of prepare_params
    returns:         (B, 1, T) float32 softmax attention weights
    """
    B, Dh = hidden.shape
    _, T, E = encoder_outputs.shape
    two_h = w_h.shape[1]
    assert w_h.shape == (Dh, two_h) and w_e.shape == (E, two_h)

    if operand_dtype is not None:
        # Optional bf16 MXU operands / halved enc DMA; ideally cast upstream.
        hidden = hidden.astype(operand_dtype)
        encoder_outputs = encoder_outputs.astype(operand_dtype)

    if tile_b is None:
        tile_b = _pick_tile(B, 16, 8)          # >=2 batch steps when B allows
    if tile_t is None:
        tile_t = _pick_tile(T, 512, 8)         # bound VMEM / enable pipelining
    assert B % tile_b == 0 and T % tile_t == 0
    if tile_b != B:
        assert tile_b % 8 == 0, "tile_b must be a multiple of 8 when tiling batch"
    if tile_t != T:
        assert tile_t % 8 == 0, "tile_t must be a multiple of 8 when tiling T"

    nb, nt = B // tile_b, T // tile_t
    ebytes = jnp.dtype(encoder_outputs.dtype).itemsize

    cost = pl.CostEstimate(
        flops=2 * B * T * E * two_h + 2 * B * Dh * two_h + 4 * B * T * two_h,
        transcendentals=B * T,
        bytes_accessed=(B * Dh * ebytes + B * T * E * ebytes
                        + (Dh + E) * two_h * ebytes + 2 * two_h * 4 + B * T * 4),
    )

    grid_spec = pltpu.PrefetchScalarGridSpec(
        num_scalar_prefetch=0,
        grid=(nb, nt),
        in_specs=[
            pl.BlockSpec((tile_b, Dh), lambda i, t: (i, 0)),
            pl.BlockSpec((tile_b, tile_t, E), lambda i, t: (i, t, 0)),
            pl.BlockSpec((Dh, two_h), lambda i, t: (0, 0)),
            pl.BlockSpec((E, two_h), lambda i, t: (0, 0)),
            pl.BlockSpec((1, two_h), lambda i, t: (0, 0)),
            pl.BlockSpec((1, two_h), lambda i, t: (0, 0)),
        ],
        out_specs=pl.BlockSpec((tile_b, 1, T), lambda i, t: (i, 0, 0)),
        scratch_shapes=[
            pltpu.VMEM((tile_b, two_h), jnp.float32),       # h_proj + bias
            pltpu.VMEM((nt, tile_b, tile_t), jnp.float32),  # resident scores
        ],
    )

    return pl.pallas_call(
        attention_kernel,
        out_shape=jax.ShapeDtypeStruct((B, 1, T), jnp.float32),
        grid_spec=grid_spec,
        compiler_params=pltpu.CompilerParams(
            dimension_semantics=("parallel", "arbitrary"),
            vmem_limit_bytes=vmem_limit_bytes),
        cost_estimate=cost,
    )(hidden, encoder_outputs, w_h, w_e, b2, v2)


def attention_reference(hidden, encoder_outputs, weight, bias, v):
    """Pure-JAX reference mirroring the PyTorch module."""
    B, T, E = encoder_outputs.shape
    h_rep = jnp.broadcast_to(hidden[:, None, :], (B, T, hidden.shape[1]))
    cat = jnp.concatenate([h_rep, encoder_outputs], axis=2)
    energy = jax.nn.relu(jnp.einsum("btd,hd->bth", cat, weight) + bias)
    scores = jnp.einsum("bth,h->bt", energy, v)
    return jax.nn.softmax(scores, axis=1)[:, None, :]


if __name__ == "__main__":
    # Small shapes consistent with the module: Attention(input_size=32, hidden_size=16)
    B, T = 2, 8
    hidden_size = 16
    Dh, E = 16, 16
    input_size = Dh + E       # 32
    two_h = 2 * hidden_size   # 32

    key = jax.random.PRNGKey(0)
    k_hid, k_enc, k_w, k_b, k_v = jax.random.split(key, 5)

    hidden = jax.random.normal(k_hid, (B, Dh), dtype=jnp.float32)
    encoder_outputs = jax.random.normal(k_enc, (B, T, E), dtype=jnp.float32)

    lin_bound = 1.0 / math.sqrt(input_size)
    weight = jax.random.uniform(k_w, (two_h, input_size), jnp.float32,
                                -lin_bound, lin_bound)
    bias = jax.random.uniform(k_b, (two_h,), jnp.float32, -lin_bound, lin_bound)
    stdv = 1.0 / math.sqrt(two_h)
    v = jax.random.uniform(k_v, (two_h,), jnp.float32, -stdv, stdv)

    # One-time parameter preparation (split + transpose; not per forward call).
    w_h, w_e, b2, v2 = prepare_params(weight, bias, v, Dh)

    out = attention_forward(hidden, encoder_outputs, w_h, w_e, b2, v2)
    out = jax.block_until_ready(out)

    ref = attention_reference(hidden, encoder_outputs, weight, bias, v)
    assert out.shape == (B, 1, T), out.shape
    assert jnp.allclose(out, ref, atol=2e-3, rtol=2e-3), "mismatch vs reference"
    # Exact divide in the epilogue -> rows sum to 1 within f32 rounding.
    assert jnp.allclose(jnp.sum(out, axis=-1), 1.0, atol=1e-4), "softmax not normalized"

    print("KERNEL_OK")
</pallas_src>

<mosaic_0001>
module attributes {stable_mosaic.version = 11 : i64} {
  func.func @attention_kernel(%arg0: i32, %arg1: i32, %arg2: memref<2x16xf32, #tpu.memory_space<vmem>>, %arg3: memref<2x8x16xf32, #tpu.memory_space<vmem>>, %arg4: memref<16x32xf32, #tpu.memory_space<vmem>>, %arg5: memref<16x32xf32, #tpu.memory_space<vmem>>, %arg6: memref<1x32xf32, #tpu.memory_space<vmem>>, %arg7: memref<1x32xf32, #tpu.memory_space<vmem>>, %arg8: memref<2x1x8xf32, #tpu.memory_space<vmem>>, %arg9: memref<2x32xf32, #tpu.memory_space<vmem>>, %arg10: memref<1x2x8xf32, #tpu.memory_space<vmem>>) attributes {dimension_semantics = [#tpu.dimension_semantics<parallel>, #tpu.dimension_semantics<arbitrary>], iteration_bounds = array<i64: 1, 1>, scalar_prefetch = 0 : i64, scratch_operands = 2 : i64, tpu.core_type = #tpu.core_type<tc>, window_params = [{transform_indices = @transform_0, window_bounds = array<i64: 2, 16>}, {transform_indices = @transform_1, window_bounds = array<i64: 2, 8, 16>}, {pipeline_mode = #tpu.pipeline_mode<synchronous>, transform_indices = @transform_2, window_bounds = array<i64: 16, 32>}, {pipeline_mode = #tpu.pipeline_mode<synchronous>, transform_indices = @transform_3, window_bounds = array<i64: 16, 32>}, {pipeline_mode = #tpu.pipeline_mode<synchronous>, transform_indices = @transform_4, window_bounds = array<i64: 1, 32>}, {pipeline_mode = #tpu.pipeline_mode<synchronous>, transform_indices = @transform_5, window_bounds = array<i64: 1, 32>}, {transform_indices = @transform_6, window_bounds = array<i64: 2, 1, 8>}]} {
    %c0_i32 = arith.constant 0 : i32
    %0 = arith.cmpi eq, %arg1, %c0_i32 : i32
    %1 = arith.extui %0 : i1 to i32
    %c0_i32_0 = arith.constant 0 : i32
    %2 = arith.cmpi ne, %1, %c0_i32_0 : i32
    scf.if %2 {
      %c0_15 = arith.constant 0 : index
      %c0_16 = arith.constant 0 : index
      %26 = vector.load %arg2[%c0_15, %c0_16] : memref<2x16xf32, #tpu.memory_space<vmem>>, vector<2x16xf32>
      %c0_17 = arith.constant 0 : index
      %c0_18 = arith.constant 0 : index
      %27 = vector.load %arg4[%c0_17, %c0_18] : memref<16x32xf32, #tpu.memory_space<vmem>>, vector<16x32xf32>
      %cst_19 = arith.constant dense<0.000000e+00> : vector<2x32xf32>
      %28 = tpu.matmul %26, %27, %cst_19 {dimension_numbers = #tpu.dot_dimension_numbers<[1], [0], [0], [1], [0, 0, 1, 1], [], []>} : vector<2x16xf32>, vector<16x32xf32>, vector<2x32xf32> -> vector<2x32xf32>
      %c0_20 = arith.constant 0 : index
      %c0_21 = arith.constant 0 : index
      %29 = vector.load %arg6[%c0_20, %c0_21] : memref<1x32xf32, #tpu.memory_space<vmem>>, vector<1x32xf32>
      %30 = vector.broadcast %29 : vector<1x32xf32> to vector<2x32xf32>
      %31 = arith.addf %28, %30 : vector<2x32xf32>
      %c0_22 = arith.constant 0 : index
      %c0_23 = arith.constant 0 : index
      %32 = vector.load %arg9[%c0_22, %c0_23] : memref<2x32xf32, #tpu.memory_space<vmem>>, vector<2x32xf32>
      tpu.vector_store %arg9[%c0_22, %c0_23], %31 {strides = array<i32>} : memref<2x32xf32, #tpu.memory_space<vmem>>, vector<2x32xf32>,
    } else {
    }
    %c0 = arith.constant 0 : index
    %c0_1 = arith.constant 0 : index
    %c0_2 = arith.constant 0 : index
    %3 = vector.load %arg3[%c0, %c0_1, %c0_2] : memref<2x8x16xf32, #tpu.memory_space<vmem>>, vector<2x8x16xf32>
    %4 = vector.shape_cast %3 : vector<2x8x16xf32> to vector<16x16xf32>
    %c0_3 = arith.constant 0 : index
    %c0_4 = arith.constant 0 : index
    %5 = vector.load %arg5[%c0_3, %c0_4] : memref<16x32xf32, #tpu.memory_space<vmem>>, vector<16x32xf32>
    %cst = arith.constant dense<0.000000e+00> : vector<16x32xf32>
    %6 = tpu.matmul %4, %5, %cst {dimension_numbers = #tpu.dot_dimension_numbers<[1], [0], [0], [1], [0, 0, 1, 1], [], []>} : vector<16x16xf32>, vector<16x32xf32>, vector<16x32xf32> -> vector<16x32xf32>
    %7 = vector.shape_cast %6 : vector<16x32xf32> to vector<2x8x32xf32>
    %c0_5 = arith.constant 0 : index
    %c0_6 = arith.constant 0 : index
    %8 = vector.load %arg9[%c0_5, %c0_6] : memref<2x32xf32, #tpu.memory_space<vmem>>, vector<2x32xf32>
    %9 = vector.shape_cast %8 : vector<2x32xf32> to vector<2x1x32xf32>
    %10 = vector.broadcast %9 : vector<2x1x32xf32> to vector<2x8x32xf32>
    %11 = arith.addf %7, %10 : vector<2x8x32xf32>
    %cst_7 = arith.constant 0.000000e+00 : f32
    %12 = vector.broadcast %cst_7 : f32 to vector<2x8x32xf32>
    %13 = arith.maximumf %11, %12 : vector<2x8x32xf32>
    %c0_8 = arith.constant 0 : index
    %c0_9 = arith.constant 0 : index
    %14 = vector.load %arg7[%c0_8, %c0_9] : memref<1x32xf32, #tpu.memory_space<vmem>>, vector<1x32xf32>
    %15 = vector.shape_cast %14 : vector<1x32xf32> to vector<1x1x32xf32>
    %16 = vector.broadcast %15 : vector<1x1x32xf32> to vector<2x8x32xf32>
    %17 = arith.mulf %13, %16 : vector<2x8x32xf32>
    %cst_10 = arith.constant dense<0.000000e+00> : vector<2x8xf32>
    %18 = vector.multi_reduction <add>, %17, %cst_10 [2] : vector<2x8x32xf32> to vector<2x8xf32>
    %19 = arith.index_cast %arg1 : i32 to index
    %c0_11 = arith.constant 0 : index
    %c0_12 = arith.constant 0 : index
    %20 = vector.load %arg10[%19, %c0_11, %c0_12] : memref<1x2x8xf32, #tpu.memory_space<vmem>>, vector<1x2x8xf32>
    %21 = vector.shape_cast %20 : vector<1x2x8xf32> to vector<2x8xf32>
    %22 = vector.shape_cast %18 : vector<2x8xf32> to vector<1x2x8xf32>
    tpu.vector_store %arg10[%19, %c0_11, %c0_12], %22 {strides = array<i32>} : memref<1x2x8xf32, #tpu.memory_space<vmem>>, vector<1x2x8xf32>,
    %c0_i32_13 = arith.constant 0 : i32
    %23 = arith.cmpi eq, %arg1, %c0_i32_13 : i32
    %24 = arith.extui %23 : i1 to i32
    %c0_i32_14 = arith.constant 0 : i32
    %25 = arith.cmpi ne, %24, %c0_i32_14 : i32
    scf.if %25 {
      %c0_15 = arith.constant 0 : index
      %c0_16 = arith.constant 0 : index
      %c0_17 = arith.constant 0 : index
      %26 = vector.load %arg10[%c0_15, %c0_16, %c0_17] : memref<1x2x8xf32, #tpu.memory_space<vmem>>, vector<1x2x8xf32>
      %cst_18 = arith.constant dense<0xFF800000> : vector<1x2xf32>
      %27 = vector.multi_reduction <maximumf>, %26, %cst_18 [2] : vector<1x2x8xf32> to vector<1x2xf32>
      %28 = vector.shape_cast %27 : vector<1x2xf32> to vector<1x2x1xf32>
      %cst_19 = arith.constant dense<0xFF800000> : vector<2x1xf32>
      %29 = vector.multi_reduction <maximumf>, %28, %cst_19 [0] : vector<1x2x1xf32> to vector<2x1xf32>
      %30 = vector.shape_cast %29 : vector<2x1xf32> to vector<1x2x1xf32>
      %31 = vector.broadcast %30 : vector<1x2x1xf32> to vector<1x2x8xf32>
      %32 = arith.subf %26, %31 : vector<1x2x8xf32>
      %33 = math.exp %32 : vector<1x2x8xf32>
      %cst_20 = arith.constant dense<0.000000e+00> : vector<1x2xf32>
      %34 = vector.multi_reduction <add>, %33, %cst_20 [2] : vector<1x2x8xf32> to vector<1x2xf32>
      %35 = vector.shape_cast %34 : vector<1x2xf32> to vector<1x2x1xf32>
      %cst_21 = arith.constant dense<0.000000e+00> : vector<2x1xf32>
      %36 = vector.multi_reduction <add>, %35, %cst_21 [0] : vector<1x2x1xf32> to vector<2x1xf32>
      %37 = vector.shape_cast %36 : vector<2x1xf32> to vector<1x2x1xf32>
      %38 = vector.broadcast %37 : vector<1x2x1xf32> to vector<1x2x8xf32>
      %39 = arith.divf %33, %38 : vector<1x2x8xf32>
      %40 = vector.shape_cast %39 : vector<1x2x8xf32> to vector<2x8xf32>
      %c0_22 = arith.constant 0 : index
      %c0_23 = arith.constant 0 : index
      %c0_24 = arith.constant 0 : index
      %41 = vector.load %arg8[%c0_22, %c0_23, %c0_24] : memref<2x1x8xf32, #tpu.memory_space<vmem>>, vector<2x1x8xf32>
      %42 = vector.shape_cast %41 : vector<2x1x8xf32> to vector<2x8xf32>
      %43 = vector.shape_cast %40 : vector<2x8xf32> to vector<2x1x8xf32>
      tpu.vector_store %arg8[%c0_22, %c0_23, %c0_24], %43 {strides = array<i32>} : memref<2x1x8xf32, #tpu.memory_space<vmem>>, vector<2x1x8xf32>,
    } else {
    }
    return
  }
  func.func @transform_0(%arg0: i32, %arg1: i32) -> (i32, i32) {
    %c0_i32 = arith.constant 0 : i32
    %c0_i32_0 = arith.constant 0 : i32
    return %arg0, %c0_i32 : i32, i32
  }
  func.func @transform_1(%arg0: i32, %arg1: i32) -> (i32, i32, i32) {
    %c0_i32 = arith.constant 0 : i32
    %c0_i32_0 = arith.constant 0 : i32
    return %arg0, %arg1, %c0_i32 : i32, i32, i32
  }
  func.func @transform_2(%arg0: i32, %arg1: i32) -> (i32, i32) {
    %c0_i32 = arith.constant 0 : i32
    %c0_i32_0 = arith.constant 0 : i32
    %c0_i32_1 = arith.constant 0 : i32
    return %c0_i32, %c0_i32_0 : i32, i32
  }
  func.func @transform_3(%arg0: i32, %arg1: i32) -> (i32, i32) {
    %c0_i32 = arith.constant 0 : i32
    %c0_i32_0 = arith.constant 0 : i32
    %c0_i32_1 = arith.constant 0 : i32
    return %c0_i32, %c0_i32_0 : i32, i32
  }
  func.func @transform_4(%arg0: i32, %arg1: i32) -> (i32, i32) {
    %c0_i32 = arith.constant 0 : i32
    %c0_i32_0 = arith.constant 0 : i32
    %c0_i32_1 = arith.constant 0 : i32
    return %c0_i32, %c0_i32_0 : i32, i32
  }
  func.func @transform_5(%arg0: i32, %arg1: i32) -> (i32, i32) {
    %c0_i32 = arith.constant 0 : i32
    %c0_i32_0 = arith.constant 0 : i32
    %c0_i32_1 = arith.constant 0 : i32
    return %c0_i32, %c0_i32_0 : i32, i32
  }
  func.func @transform_6(%arg0: i32, %arg1: i32) -> (i32, i32, i32) {
    %c0_i32 = arith.constant 0 : i32
    %c0_i32_0 = arith.constant 0 : i32
    %c0_i32_1 = arith.constant 0 : i32
    return %arg0, %c0_i32, %c0_i32_0 : i32, i32, i32
  }
}

</mosaic_0001>

<llo_original>
// kernel: tpu_custom_call.1
$region0: #{tpu_custom_call.1}
  #allocation0 [shape = 'u32[]', space=smem, size = 0x4, offset = 0x4, fixed_abs, tag = 'smem constant byte address 0x4 - core index']
  #allocation1 [shape = 'u32[144,128]{1,0:T(1,128)}', space=vmem, size = 0x12000, scoped, tag = 'internal scratch']
  #allocation2 [shape = 'f32[2,32]{1,0:T(2,128)}', space=vmem, size = 0x400, scoped, tag = 'scratch operand']
  #allocation3 [shape = 'f32[1,2,8]{2,1,0:T(2,128)}', space=vmem, size = 0x400, scoped, tag = 'scratch operand']
  %s0 = inlined_call_operand.hbm [shape: f32[2,16], index: 0, kind: input, shape index: {}]
  %s1 = inlined_call_operand.hbm [shape: f32[2,8,16], index: 1, kind: input, shape index: {}]
  %s2 = inlined_call_operand.hbm [shape: f32[16,32], index: 2, kind: input, shape index: {}]
  %s3 = inlined_call_operand.hbm [shape: f32[16,32], index: 3, kind: input, shape index: {}]
  %s4 = inlined_call_operand.vmem [shape: f32[1,32], index: 4, kind: input, shape index: {}]
  %s5 = inlined_call_operand.vmem [shape: f32[1,32], index: 5, kind: input, shape index: {}]
  %s6 = inlined_call_operand.hbm [shape: f32[2,1,8], index: 6, kind: output, shape index: {}]
  %s7 = sld [smem:[#allocation0]]
  $region58: #{tpu_custom_call.1} parent=0
    _
  %s9 = ssub.s32 1, %s7
  %s10 = scalar_select 0, %s9, %s7
  $region1: #{tpu_custom_call.1} parent=0
    #allocation4 [shape = 'u8[1024]{0}', space=vmem, size = 0x400, scoped, tag = 'input window, operand 0, single buffered']
    #allocation5 [shape = 's32[1]{0}', space=sflag, size = 0x4, scoped, tag = 'scoped memory for tpu_custom_call.1']
    #allocation6 [shape = 's32[1]{0}', space=sflag, size = 0x4, scoped, tag = 'scoped memory for tpu_custom_call.1']
    #allocation7 [shape = 'u8[8192]{0}', space=vmem, size = 0x2000, scoped, tag = 'input window, operand 1, single buffered']
    #allocation8 [shape = 's32[1]{0}', space=sflag, size = 0x4, scoped, tag = 'scoped memory for tpu_custom_call.1']
    #allocation9 [shape = 'u8[8192]{0}', space=vmem, size = 0x2000, scoped, tag = 'input window, operand 2, single buffered']
    #allocation10 [shape = 'u8[8192]{0}', space=vmem, size = 0x2000, scoped, tag = 'input window, operand 3, single buffered']
    #allocation11 [shape = 's32[1]{0}', space=sflag, size = 0x4, scoped, tag = 'scoped memory for tpu_custom_call.1']
    #allocation12 [shape = 'u8[1024]{0}', space=vmem, size = 0x400, scoped, tag = 'output window, operand 0, single buffered']
    %11 = vsyncpa [#allocation5], 0
    %12 = vsyncpa [#allocation8], 0
    %13 = vsyncpa [#allocation11], 0
    %14 = vsyncpa [#allocation6], 0
    // Predicated region
    $region2: #{tpu_custom_call.1} parent=1 // pred_check
      _
    $region3: #{tpu_custom_call.1} parent=1 // pred_check_branch
      %16 = sbr.rel (0) target = $region5
    $region4: #{tpu_custom_call.1} parent=1 // pred_region
      %s18 = ssub.s32 32, 32
      %19 = vsyncadd [#allocation5], %s18
      %s21 = sshll.u32 [#allocation4], 4
      %s22 = int_to_ptr.vmem [resolvable:$true] %s21
      %24 = dma.hbm_to_vmem [thread:$0]  %s0, 32, %s22, [#allocation5]
    $region5: #{tpu_custom_call.1} parent=1 // pred_fallthru
      _
    // Predicated region
    $region6: #{tpu_custom_call.1} parent=1 // pred_check
      _
    $region7: #{tpu_custom_call.1} parent=1 // pred_check_branch
      %26 = sbr.rel (0) target = $region9
    $region8: #{tpu_custom_call.1} parent=1 // pred_region
      %s28 = ssub.s32 256, 256
      %29 = vsyncadd [#allocation8], %s28
      %s30 = sshll.u32 [#allocation7], 4
      %s31 = int_to_ptr.vmem [resolvable:$true] %s30
      %36 = dma.hbm_to_vmem [thread:$0]  %s1, 256, %s31, [#allocation8], 128, 128, 8
    $region9: #{tpu_custom_call.1} parent=1 // pred_fallthru
      _
    // Predicated region
    $region10: #{tpu_custom_call.1} parent=1 // pred_check
      _
    $region11: #{tpu_custom_call.1} parent=1 // pred_check_branch
      %38 = sbr.rel (0) target = $region13
    $region12: #{tpu_custom_call.1} parent=1 // pred_region
      %s40 = ssub.s32 256, 256
      %41 = vsyncadd [#allocation8], %s40
      %s42 = sshll.u32 [#allocation9], 4
      %s43 = int_to_ptr.vmem [resolvable:$true] %s42
      %48 = dma.hbm_to_vmem [thread:$0]  %s2, 256, %s43, [#allocation8], 128, 128, 8
    $region13: #{tpu_custom_call.1} parent=1 // pred_fallthru
      _
    // Predicated region
    $region14: #{tpu_custom_call.1} parent=1 // pred_check
      _
    $region15: #{tpu_custom_call.1} parent=1 // pred_check_branch
      %50 = sbr.rel (0) target = $region17
    $region16: #{tpu_custom_call.1} parent=1 // pred_region
      %s52 = ssub.s32 256, 256
      %53 = vsyncadd [#allocation11], %s52
      %s54 = sshll.u32 [#allocation10], 4
      %s55 = int_to_ptr.vmem [resolvable:$true] %s54
      %60 = dma.hbm_to_vmem [thread:$0]  %s3, 256, %s55, [#allocation11], 128, 128, 8
    $region17: #{tpu_custom_call.1} parent=1 // pred_fallthru
      _
    // Predicated region
    $region18: #{tpu_custom_call.1} parent=1 // pred_check
      _
    $region19: #{tpu_custom_call.1} parent=1 // pred_check_branch
      %62 = sbr.rel (0) target = $region21
    $region20: #{tpu_custom_call.1} parent=1 // pred_region
      _
    $region21: #{tpu_custom_call.1} parent=1 // pred_fallthru
      _
    // Predicated region
    $region22: #{tpu_custom_call.1} parent=1 // pred_check
      _
    $region23: #{tpu_custom_call.1} parent=1 // pred_check_branch
      %64 = sbr.rel (0) target = $region25
    $region24: #{tpu_custom_call.1} parent=1 // pred_region
      _
    $region25: #{tpu_custom_call.1} parent=1 // pred_fallthru
      _
    // Predicated region
    $region26: #{tpu_custom_call.1} parent=1 // pred_check
      _
    $region27: #{tpu_custom_call.1} parent=1 // pred_check_branch
      %66 = sbr.rel (0) target = $region29
    $region28: #{tpu_custom_call.1} parent=1 // pred_region
      %67 = dma.done [#allocation5], 32
    $region29: #{tpu_custom_call.1} parent=1 // pred_fallthru
      _
    // Predicated region
    $region30: #{tpu_custom_call.1} parent=1 // pred_check
      _
    $region31: #{tpu_custom_call.1} parent=1 // pred_check_branch
      %69 = sbr.rel (0) target = $region33
    $region32: #{tpu_custom_call.1} parent=1 // pred_region
      %70 = dma.done [#allocation8], 256
    $region33: #{tpu_custom_call.1} parent=1 // pred_fallthru
      _
    // Predicated region
    $region34: #{tpu_custom_call.1} parent=1 // pred_check
      _
    $region35: #{tpu_custom_call.1} parent=1 // pred_check_branch
      %72 = sbr.rel (0) target = $region37
    $region36: #{tpu_custom_call.1} parent=1 // pred_region
      %73 = dma.done [#allocation8], 256
    $region37: #{tpu_custom_call.1} parent=1 // pred_fallthru
      _
    // Predicated region
    $region38: #{tpu_custom_call.1} parent=1 // pred_check
      _
    $region39: #{tpu_custom_call.1} parent=1 // pred_check_branch
      %75 = sbr.rel (0) target = $region41
    $region40: #{tpu_custom_call.1} parent=1 // pred_region
      %76 = dma.done [#allocation11], 256
    $region41: #{tpu_custom_call.1} parent=1 // pred_fallthru
      _
    %p77 = scmp.eq.s32.totalorder 0, 0
    // Predicated region
    $region42: #{tpu_custom_call.1} parent=1 // pred_check
      %p78 = pneg %p77
    $region43: #{tpu_custom_call.1} parent=1 // pred_check_branch
      %80 = sbr.rel (%p78) target = $region45
    $region44: #{tpu_custom_call.1} parent=1 // pred_region
      %v81 = vld [vmem:[#allocation4] sm:$0x3]
      %v82 = vld [vmem:[#allocation9] sm:$0xff]
      %v83 = vld [vmem:[#allocation9 + $0x8] sm:$0xff]
      %v84 = vld [vmem:[%s4] sm:$0x1]
      %v86 = vlaneseq
      %v87 = vshrl.u32 %v86, 7
      %v88 = vsub.s32 0, %v87
      %v89 = vrot.slane %v84, %v88
      %vm91 = vcmask 130048
      %v93 = vsel %vm91, %v81, 0
      %95 = vmatprep.subr.mxu0 0.0
      %96 = vmatpush1.msra.mxu0 %v82
      %97 = vmatprep.subr.mxu0 0.0
      %98 = vmatpush1.msra.mxu0 %v83
      %99 = vmatprep.subr.mxu0 0.0
      %100 = vmatpush1.msra.mxu0 0.0
      %101 = vmatprep.subr.mxu0 0.0
      %102 = vmatpush1.msra.mxu0 0.0
      %103 = vmatprep.subr.mxu0 0.0
      %104 = vmatpush1.msra.mxu0 0.0
      %105 = vmatprep.subr.mxu0 0.0
      %106 = vmatpush1.msra.mxu0 0.0
      %107 = vmatprep.subr.mxu0 0.0
      %108 = vmatpush1.msra.mxu0 0.0
      %109 = vmatprep.subr.mxu0 0.0
      %110 = vmatpush1.msra.mxu0 0.0
      %111 = vmatprep.subr.mxu0 0.0
      %112 = vmatpush1.msra.mxu0 0.0
      %113 = vmatprep.subr.mxu0 0.0
      %114 = vmatpush1.msra.mxu0 0.0
      %115 = vmatprep.subr.mxu0 0.0
      %116 = vmatpush1.msra.mxu0 0.0
      %117 = vmatprep.subr.mxu0 0.0
      %118 = vmatpush1.msra.mxu0 0.0
      %119 = vmatprep.subr.mxu0 0.0
      %120 = vmatpush1.msra.mxu0 0.0
      %121 = vmatprep.subr.mxu0 0.0
      %122 = vmatpush1.msra.mxu0 0.0
      %123 = vmatprep.subr.mxu0 0.0
      %124 = vmatpush1.msra.mxu0 0.0
      %125 = vmatprep.subr.mxu0 0.0
      %126 = vmatpush1.msra.mxu0 0.0
      %127 = vmatprep.subr.mxu0 0.0
      %128 = vmatpush1.msra.mxu0 0.0
      %129 = vmatprep.subr.mxu0 0.0
      %130 = vmatpush1.msra.mxu0 0.0
      %131 = vmatprep.subr.mxu0 0.0
      %132 = vmatpush1.msra.mxu0 0.0
      %133 = vmatprep.subr.mxu0 0.0
      %134 = vmatpush1.msra.mxu0 0.0
      %135 = vmatprep.subr.mxu0 0.0
      %136 = vmatpush1.msra.mxu0 0.0
      %137 = vmatprep.subr.mxu0 0.0
      %138 = vmatpush1.msra.mxu0 0.0
      %139 = vmatprep.subr.mxu0 0.0
      %140 = vmatpush1.msra.mxu0 0.0
      %141 = vmatprep.subr.mxu0 0.0
      %142 = vmatpush1.msra.mxu0 0.0
      %143 = vmatprep.subr.mxu0 0.0
      %144 = vmatpush1.msra.mxu0 0.0
      %145 = vmatprep.subr.mxu0 0.0
      %146 = vmatpush1.msra.mxu0 0.0
      %147 = vmatprep.subr.mxu0 0.0
      %148 = vmatpush1.msra.mxu0 0.0
      %149 = vmatprep.subr.mxu0 0.0
      %150 = vmatpush1.msra.mxu0 0.0
      %151 = vmatprep.subr.mxu0 0.0
      %152 = vmatpush1.msra.mxu0 0.0
      %153 = vmatprep.subr.mxu0 0.0
      %154 = vmatpush1.msra.mxu0 0.0
      %155 = vmatprep.subr.mxu0 0.0
      %156 = vmatpush1.msra.mxu0 0.0
      %157 = vmatprep.subr.mxu0 0.0
      %158 = vmatpush1.msra.mxu0 0.0
      %159 = vmatprep.mubr.f32.mxu0 0.0
      %160 = vmatmul.mubr.f32.gmra.mrb[0].mxu0 %v93
      %v161 = vpop.f32.mrb[0].mxu0
      %v162 = vadd.f32 %v89, %v161
      %v163 = vpop.f32.mrb[0].mxu0
      %164 = vdwg.mxu0
      %vm165 = vcmask 254976
      %166 = vst.msk [vmem:[#allocation2] sm:$0x3] %vm165, %v162
    $region45: #{tpu_custom_call.1} parent=1 // pred_fallthru
      _
    %v167 = vld [vmem:[#allocation7] sm:$0xff]
    %v168 = vld [vmem:[#allocation7 + $0x8] sm:$0xff]
    %v169 = vld [vmem:[#allocation10] sm:$0xff]
    %v170 = vld [vmem:[#allocation10 + $0x8] sm:$0xff]
    %vm171 = vcmask 130048
    %v173 = vsel %vm171, %v167, 0
    %v176 = vsel %vm171, %v168, 0
    %178 = vmatprep.subr.mxu0 0.0
    %179 = vmatpush1.msra.mxu0 %v169
    %180 = vmatprep.subr.mxu0 0.0
    %181 = vmatpush1.msra.mxu0 %v170
    %182 = vmatprep.subr.mxu0 0.0
    %183 = vmatpush1.msra.mxu0 0.0
    %184 = vmatprep.subr.mxu0 0.0
    %185 = vmatpush1.msra.mxu0 0.0
    %186 = vmatprep.subr.mxu0 0.0
    %187 = vmatpush1.msra.mxu0 0.0
    %188 = vmatprep.subr.mxu0 0.0
    %189 = vmatpush1.msra.mxu0 0.0
    %190 = vmatprep.subr.mxu0 0.0
    %191 = vmatpush1.msra.mxu0 0.0
    %192 = vmatprep.subr.mxu0 0.0
    %193 = vmatpush1.msra.mxu0 0.0
    %194 = vmatprep.subr.mxu0 0.0
    %195 = vmatpush1.msra.mxu0 0.0
    %196 = vmatprep.subr.mxu0 0.0
    %197 = vmatpush1.msra.mxu0 0.0
    %198 = vmatprep.subr.mxu0 0.0
    %199 = vmatpush1.msra.mxu0 0.0
    %200 = vmatprep.subr.mxu0 0.0
    %201 = vmatpush1.msra.mxu0 0.0
    %202 = vmatprep.subr.mxu0 0.0
    %203 = vmatpush1.msra.mxu0 0.0
    %204 = vmatprep.subr.mxu0 0.0
    %205 = vmatpush1.msra.mxu0 0.0
    %206 = vmatprep.subr.mxu0 0.0
    %207 = vmatpush1.msra.mxu0 0.0
    %208 = vmatprep.subr.mxu0 0.0
    %209 = vmatpush1.msra.mxu0 0.0
    %210 = vmatprep.subr.mxu0 0.0
    %211 = vmatpush1.msra.mxu0 0.0
    %212 = vmatprep.subr.mxu0 0.0
    %213 = vmatpush1.msra.mxu0 0.0
    %214 = vmatprep.subr.mxu0 0.0
    %215 = vmatpush1.msra.mxu0 0.0
    %216 = vmatprep.subr.mxu0 0.0
    %217 = vmatpush1.msra.mxu0 0.0
    %218 = vmatprep.subr.mxu0 0.0
    %219 = vmatpush1.msra.mxu0 0.0
    %220 = vmatprep.subr.mxu0 0.0
    %221 = vmatpush1.msra.mxu0 0.0
    %222 = vmatprep.subr.mxu0 0.0
    %223 = vmatpush1.msra.mxu0 0.0
    %224 = vmatprep.subr.mxu0 0.0
    %225 = vmatpush1.msra.mxu0 0.0
    %226 = vmatprep.subr.mxu0 0.0
    %227 = vmatpush1.msra.mxu0 0.0
    %228 = vmatprep.subr.mxu0 0.0
    %229 = vmatpush1.msra.mxu0 0.0
    %230 = vmatprep.subr.mxu0 0.0
    %231 = vmatpush1.msra.mxu0 0.0
    %232 = vmatprep.subr.mxu0 0.0
    %233 = vmatpush1.msra.mxu0 0.0
    %234 = vmatprep.subr.mxu0 0.0
    %235 = vmatpush1.msra.mxu0 0.0
    %236 = vmatprep.subr.mxu0 0.0
    %237 = vmatpush1.msra.mxu0 0.0
    %238 = vmatprep.subr.mxu0 0.0
    %239 = vmatpush1.msra.mxu0 0.0
    %240 = vmatprep.subr.mxu0 0.0
    %241 = vmatpush1.msra.mxu0 0.0
    %242 = vmatprep.mubr.f32.mxu0 0.0
    %243 = vmatmul.mubr.f32.gmra.mrb[0].mxu0 %v173
    %v244 = vpop.f32.mrb[0].mxu0
    %v245 = vadd.f32 0.0, %v244
    %v246 = vpop.f32.mrb[0].mxu0
    %247 = vmatprep.mubr.f32.mxu0 0.0
    %248 = vmatmul.mubr.f32.gmra.mrb[0].mxu0 %v176
    %v249 = vpop.f32.mrb[0].mxu0
    %v250 = vadd.f32 0.0, %v249
    %v251 = vpop.f32.mrb[0].mxu0
    %252 = vdwg.mxu0
    %v253 = vld [vmem:[#allocation2] sm:$0x3]
    %v256 = vunpack.c.l.s4 1966171168
    %v257 = vunpack.c.0.s8 %v256
    %v258 = vlaneseq
    %v259 = vshrl.u32 %v258, 7
    %v260 = vsub.s32 %v257, %v259
    %v261 = vrot.slane %v253, %v260
    %v262 = vcombine.high %v261, %v261
    %v264 = vunpack.c.l.s4 1966171168
    %v265 = vunpack.c.0.s8 %v264
    %v266 = vlaneseq
    %v267 = vshrl.u32 %v266, 7
    %v268 = vsub.s32 %v265, %v267
    %v269 = vrot.slane %v261, %v268
    %v271 = vunpack.c.l.s4 1966171168
    %v272 = vunpack.c.0.s8 %v271
    %v273 = vlaneseq
    %v274 = vshrl.u32 %v273, 7
    %v275 = vsub.s32 %v272, %v274
    %v276 = vrot.slane %v262, %v275
    %v277 = vlaneseq
    %v278 = vshrl.u32 %v277, 7
    %v279 = vsub.s32 0, %v278
    %v280 = vrot.slane %v269, %v279
    %v281 = vlaneseq
    %v282 = vshrl.u32 %v281, 7
    %v283 = vsub.s32 0, %v282
    %v284 = vrot.slane %v276, %v283
    %v287 = vadd.f32 %v245, %v280
    %v288 = vadd.f32 %v250, %v284
    %v289 = vmax.f32 %v287, 0.0
    %v290 = vmax.f32 %v288, 0.0
    %v291 = vld [vmem:[%s5] sm:$0x1]
    %v293 = vlaneseq
    %v294 = vshrl.u32 %v293, 7
    %v295 = vsub.s32 0, %v294
    %v296 = vrot.slane %v291, %v295
    %v298 = vmul.f32 %v289, %v296
    %v299 = vmul.f32 %v290, %v296
    %vm300 = vcmask 261120
    %v301 = vsel %vm300, %v298, 0.0
    %302 = vadd.xlane.f32.xlu0 %v301
    %v303 = vpop.xlane.xlu0 %302
    %v304 = vsel %vm300, %v299, 0.0
    %305 = vadd.xlane.f32.xlu0 %v304
    %v306 = vpop.xlane.xlu0 %305
    %v309 = vlaneseq
    %v310 = vand.u32 %v309, 127
    %v311 = vlaneseq
    %v312 = vshrl.u32 %v311, 7
    %v313 = vsub.s32 %v310, %v312
    %v314 = vrot.slane %v303, %v313
    %v315 = vlaneseq
    %v316 = vshrl.u32 %v315, 7
    %v317 = vsub.s32 %v310, %v316
    %v318 = vrot.slane %v306, %v317
    %vm319 = vcmask 1041409
    %v320 = vsel %vm319, %v318, %v314
    %s322 = smul.u32 0, 2
    %s323 = scalar_lea.vmem [#allocation3], %s322
    %vm324 = vcmask 58368
    %325 = vst.msk [vmem:[%s323] sm:$0x3] %vm324, %v320
    // Predicated region
    $region46: #{tpu_custom_call.1} parent=1 // pred_check
      %p326 = pneg %p77
    $region47: #{tpu_custom_call.1} parent=1 // pred_check_branch
      %328 = sbr.rel (%p326) target = $region49
    $region48: #{tpu_custom_call.1} parent=1 // pred_region
      %v329 = vld [vmem:[#allocation3] sm:$0x3]
      %v330 = vsel %vm324, %v329, -inf
      %331 = vmax.xlane.f32.xlu0 %v330
      %v332 = vpop.xlane.xlu0 %331
      %v333 = vsub.f32 %v329, %v332
      %v334 = vmul.f32 %v333, 1.442695
      %v335 = vpow.pop %v334
      %v336 = vsel %vm324, %v335, 0.0
      %337 = vadd.xlane.f32.xlu0 %v336
      %v338 = vpop.xlane.xlu0 %337
      %v339 = vadd.f32 %v338, 0.0
      %v340 = vrcp.pop %v339
      %v341 = vmul.f32 %v335, %v340
      %v344 = vunpack.c.l.s4 1966171168
      %v345 = vunpack.c.0.s8 %v344
      %v346 = vlaneseq
      %v347 = vshrl.u32 %v346, 7
      %v348 = vsub.s32 %v345, %v347
      %v349 = vrot.slane %v341, %v348
      %v350 = vcombine.high %v349, %v349
      %v352 = vunpack.c.l.s4 1966171168
      %v353 = vunpack.c.0.s8 %v352
      %v354 = vlaneseq
      %v355 = vshrl.u32 %v354, 7
      %v356 = vsub.s32 %v353, %v355
      %v357 = vrot.slane %v349, %v356
      %v359 = vunpack.c.l.s4 1966171168
      %v360 = vunpack.c.0.s8 %v359
      %v361 = vlaneseq
      %v362 = vshrl.u32 %v361, 7
      %v363 = vsub.s32 %v360, %v362
      %v364 = vrot.slane %v350, %v363
      %vm367 = vcmask 57344
      %368 = vst.msk [vmem:[#allocation12] sm:$0x1] %vm367, %v357
      %369 = vst.msk [vmem:[#allocation12 + $0x1] sm:$0x1] %vm367, %v364
    $region49: #{tpu_custom_call.1} parent=1 // pred_fallthru
      _
    // Predicated region
    $region50: #{tpu_custom_call.1} parent=1 // pred_check
      _
    $region51: #{tpu_custom_call.1} parent=1 // pred_check_branch
      %371 = sbr.rel (0) target = $region53
    $region52: #{tpu_custom_call.1} parent=1 // pred_region
      %s373 = ssub.s32 32, 32
      %374 = vsyncadd [#allocation6], %s373
      %s375 = sshll.u32 [#allocation12], 4
      %s376 = int_to_ptr.vmem [resolvable:$true] %s375
      %381 = dma.vmem_to_hbm [thread:$0]  %s376, 32, %s6, [#allocation6], 16, 16, 1
    $region53: #{tpu_custom_call.1} parent=1 // pred_fallthru
      _
    // Predicated region
    $region54: #{tpu_custom_call.1} parent=1 // pred_check
      _
    $region55: #{tpu_custom_call.1} parent=1 // pred_check_branch
      %383 = sbr.rel (0) target = $region57
    $region56: #{tpu_custom_call.1} parent=1 // pred_region
      %384 = dma.done [#allocation6], 32
    $region57: #{tpu_custom_call.1} parent=1 // pred_fallthru
      _
    %385 = vsyncpa [#allocation5], 1
    %386 = vsyncpa [#allocation8], 1
    %387 = vsyncpa [#allocation11], 1
    %388 = vsyncpa [#allocation6], 1

</llo_original>
